<compile_context>
chip_gen: v7x
topology: tpu7x:2x2x1
jax: 0.10.0
libtpu: 0.0.40
codegen_flags: <defaults>
</compile_context>

<pallas_src>
import functools

import jax
import jax.numpy as jnp
from jax import lax
from jax.experimental import pallas as pl
from jax.experimental.pallas import tpu as pltpu


def _subpixel_conv_kernel(x_ref, w_ref, b_ref, mask_ref, o_ref, slab_ref, *, width):
    # x_ref:    (1, 1, Cin, L)         bf16; L = (Ht+2)*W + 2.  Row-padded input tile,
    #                                  spatial flattened onto lanes, one zero element
    #                                  prepended / appended.
    # w_ref:    (2, 2, Cout, 4*Cin)    bf16 effective 2x2 banks; K ordered (dc, dr, cin).
    # b_ref:    (Cout, 1)              f32 bias.
    # mask_ref: (2, M)                 bf16; [0] kills col j==0 lanes (left-tap wrap),
    #                                  [1] kills col j==W-1 lanes (right-tap wrap).
    # o_ref:    (1, 1, 2, 2, Cout, M)  output planes per sub-position (a, b), M = Ht*W.
    # slab_ref: (6*Cin, M)             bf16 scratch: im2col slab for one sub-row a.
    cin = x_ref.shape[2]
    m = o_ref.shape[5]

    bias = b_ref[...].astype(jnp.float32)          # (Cout, 1) -- loaded once (hoisted)
    mask_l = mask_ref[0:1, :]                      # (1, M)
    mask_r = mask_ref[1:2, :]                      # (1, M)

    for a in range(2):                             # row sub-position (static, unrolled)
        # Build the 6*Cin-row im2col slab for this sub-row ONCE; reused by both b.
        for dc in range(3):                        # absolute column tap offset
            for dr in range(2):                    # row tap offset
                start = (a + dr) * width + dc      # flat lane offset of this tap
                piece = x_ref[0, 0, :, start:start + m]           # (Cin, M)
                if dc == 0:
                    piece = piece * mask_l         # zero the wrapped left-edge lanes
                elif dc == 2:
                    piece = piece * mask_r         # zero the wrapped right-edge lanes
                k0 = (dc * 2 + dr) * cin
                slab_ref[k0:k0 + cin, :] = piece
        for b in range(2):                         # col sub-position (static, unrolled)
            # One fused-K MXU matmul per (a, b): contiguous 4*Cin block of the slab.
            acc = jnp.dot(w_ref[a, b],
                          slab_ref[2 * b * cin:(2 * b + 4) * cin, :],
                          preferred_element_type=jnp.float32)     # (Cout, M) f32
            o_ref[0, 0, a, b] = (acc + bias).astype(o_ref.dtype)


def _effective_weights(weight):
    """OIHW (Cout, Cin, 3, 3) -> (2[a], 2[b], Cout, 4*Cin) sub-pixel 2x2 banks.

    The K axis is ordered (dc, dr, cin) so that the (a, b) bank multiplies a
    contiguous 4*Cin-row block of the in-kernel 6*Cin im2col slab.
    """
    cout, cin = weight.shape[0], weight.shape[1]
    w = jnp.transpose(weight, (2, 3, 1, 0))                        # (3[u], 3[v], Cin, Cout)
    # Combine kernel rows per row sub-position a.
    wr = jnp.stack([jnp.stack([w[0], w[1] + w[2]], axis=0),        # a = 0
                    jnp.stack([w[0] + w[1], w[2]], axis=0)], 0)    # (2a, 2dr, 3v, Cin, Cout)
    # Combine kernel cols per col sub-position b.
    wc = jnp.stack(
        [jnp.stack([wr[:, :, 0], wr[:, :, 1] + wr[:, :, 2]], 2),   # b = 0
         jnp.stack([wr[:, :, 0] + wr[:, :, 1], wr[:, :, 2]], 2)],  # b = 1
        axis=1)                                    # (2a, 2b, 2dr, 2dc, Cin, Cout)
    wk = jnp.transpose(wc, (0, 1, 5, 3, 2, 4))     # (2a, 2b, Cout, 2dc, 2dr, Cin)
    return wk.reshape(2, 2, cout, 4 * cin)


def _round_up(v, k):
    return -(-v // k) * k


def _tile_vmem_bytes(ht, width, cin, cout):
    """Rough per-grid-step VMEM need (accounts for sublane/lane padding)."""
    def arr(rows, cols, sub, byt):
        return _round_up(rows, sub) * _round_up(cols, 128) * byt
    m = ht * width
    flat = (ht + 2) * width + 2
    in_blk = 2 * arr(cin, flat, 16, 2)             # bf16 input tile, double-buffered
    out_blk = 2 * 4 * arr(cout, m, 8, 4)           # f32 output tile, double-buffered
    w_blk = 4 * arr(cout, 4 * cin, 16, 2)
    slab = arr(6 * cin, m, 16, 2)                  # im2col scratch
    masks = arr(2, m, 16, 2)
    live = 2 * arr(cin, m, 16, 2) + 2 * arr(cout, m, 8, 4)   # piece + acc temporaries
    return in_blk + out_blk + w_blk + slab + masks + live


def _vmem_limit_bytes():
    """Generation-aware VMEM cap: ~3/4 of physical; conservative fallback = v7x 64 MiB."""
    phys = 64 * 1024 * 1024
    try:
        info = pltpu.get_tpu_info()
        for name in ("vmem_capacity_bytes", "vmem_bytes", "vmem_size_bytes"):
            val = getattr(info, name, None)
            if val:
                phys = int(val)
                break
    except Exception:
        pass
    return min((phys * 3) // 4, 96 * 1024 * 1024)


def _choose_tile_h(h, width, cin, cout, budget):
    """Largest divisor of H whose per-step working set fits well inside the budget."""
    target = (budget * 3) // 4
    for ht in sorted((d for d in range(1, h + 1) if h % d == 0), reverse=True):
        if _tile_vmem_bytes(ht, width, cin, cout) <= target:
            return ht
    return 1


def upsample_conv(x_nchw, weight, bias, *, compute_dtype=jnp.bfloat16):
    """Nearest-2x upsample + Conv2d(k=3, pad=1). x: (N,Cin,H,W) -> (N,Cout,2H,2W)."""
    n, cin, h, width = x_nchw.shape
    cout = weight.shape[0]
    out_dtype = x_nchw.dtype

    vmem_limit = _vmem_limit_bytes()
    ht = _choose_tile_h(h, width, cin, cout, vmem_limit)
    nt = h // ht
    m = ht * width
    flat_len = (ht + 2) * width + 2

    # --- XLA glue at ORIGINAL resolution (pad / halo-tile / flatten, one pass) ---
    x_rp = jnp.pad(x_nchw, ((0, 0), (0, 0), (1, 1), (0, 0))).astype(compute_dtype)
    if nt == 1:
        tiles = x_rp[:, None]                                        # (N, 1, Cin, H+2, W)
    else:
        tiles = jnp.stack([x_rp[:, :, t * ht:t * ht + ht + 2, :]     # 1-row halo per tile
                           for t in range(nt)], axis=1)              # (N, nT, Cin, Ht+2, W)
    x_flat = tiles.reshape(n, nt, cin, (ht + 2) * width)
    x_flat = jnp.pad(x_flat, ((0, 0), (0, 0), (0, 0), (1, 1)))       # (N, nT, Cin, L)

    w_banks = _effective_weights(weight).astype(compute_dtype)       # (2, 2, Cout, 4*Cin)
    b_col = bias.reshape(cout, 1).astype(jnp.float32)

    lane = jnp.arange(m, dtype=jnp.int32) % width
    masks = jnp.stack([(lane != 0), (lane != width - 1)]).astype(compute_dtype)  # (2, M)

    flops = 2 * n * 16 * h * width * cin * cout
    bytes_acc = (int(x_flat.size) * 2 + int(w_banks.size) * 2 + cout * 4 + 2 * m * 2
                 + n * nt * 4 * m * cout * jnp.dtype(out_dtype).itemsize)

    kernel = functools.partial(_subpixel_conv_kernel, width=width)
    y = pl.pallas_call(
        kernel,
        out_shape=jax.ShapeDtypeStruct((n, nt, 2, 2, cout, m), out_dtype),
        grid_spec=pltpu.PrefetchScalarGridSpec(
            num_scalar_prefetch=0,
            grid=(n, nt),
            in_specs=[
                pl.BlockSpec((1, 1, cin, flat_len), lambda i, t: (i, t, 0, 0)),
                pl.BlockSpec((2, 2, cout, 4 * cin), lambda i, t: (0, 0, 0, 0)),
                pl.BlockSpec((cout, 1), lambda i, t: (0, 0)),
                pl.BlockSpec((2, m), lambda i, t: (0, 0)),
            ],
            out_specs=pl.BlockSpec((1, 1, 2, 2, cout, m),
                                   lambda i, t: (i, t, 0, 0, 0, 0)),
            scratch_shapes=[pltpu.VMEM((6 * cin, m), compute_dtype)],
        ),
        compiler_params=pltpu.CompilerParams(
            dimension_semantics=("parallel", "parallel"),
            vmem_limit_bytes=vmem_limit),
        cost_estimate=pl.CostEstimate(flops=flops, transcendentals=0,
                                      bytes_accessed=bytes_acc),
    )(x_flat, w_banks, b_col, masks)

    # Pixel shuffle + channel-major -> NCHW (single fused transpose pass).
    y = y.reshape(n, nt, 2, 2, cout, ht, width)
    out = jnp.transpose(y, (0, 4, 1, 5, 2, 6, 3)).reshape(n, cout, 2 * h, 2 * width)
    return out
    # TODO(synk): if even Ht=1 exceeds the budget (extremely wide rows) add a W-tile
    # axis; the halo duplication could then move to a manual make_async_copy
    # double-buffer instead of the wrapper-side stack.


def _reference(x_nchw, weight, bias):
    # Pure-JAX reference (XLA conv on the materialized upsampled input).
    x_up = jnp.repeat(jnp.repeat(x_nchw, 2, axis=2), 2, axis=3)
    out = lax.conv_general_dilated(
        x_up, weight, window_strides=(1, 1), padding=((1, 1), (1, 1)),
        dimension_numbers=("NCHW", "OIHW", "NCHW"))
    return out + bias.reshape(1, -1, 1, 1)


if __name__ == "__main__":
    key = jax.random.PRNGKey(0)
    k_x, k_w, k_b = jax.random.split(key, 3)

    N, Cin, Cout, H, W = 2, 4, 8, 16, 16

    x = jax.random.normal(k_x, (N, Cin, H, W), dtype=jnp.float32)

    # Deterministic init mimicking nn.Conv2d defaults: U(-1/sqrt(fan_in), +..)
    fan_in = Cin * 3 * 3
    bound = 1.0 / (fan_in ** 0.5)
    weight = jax.random.uniform(k_w, (Cout, Cin, 3, 3), jnp.float32,
                                minval=-bound, maxval=bound)
    bias = jax.random.uniform(k_b, (Cout,), jnp.float32,
                              minval=-bound, maxval=bound)

    out = jax.block_until_ready(jax.jit(upsample_conv)(x, weight, bias))
    assert out.shape == (N, Cout, 2 * H, 2 * W), out.shape

    ref = jax.block_until_ready(_reference(x, weight, bias))
    # bf16 MXU operands (f32 accumulation) -> loosened tolerance vs. f32 XLA reference.
    assert jnp.allclose(out, ref, rtol=2e-2, atol=2e-2), \
        float(jnp.max(jnp.abs(out - ref)))

    print("KERNEL_OK")
</pallas_src>

<mosaic_0001>
module attributes {stable_mosaic.version = 11 : i64} {
  func.func @_subpixel_conv_kernel(%arg0: i32, %arg1: i32, %arg2: memref<1x1x4x290xbf16, #tpu.memory_space<vmem>>, %arg3: memref<2x2x8x16xbf16, #tpu.memory_space<vmem>>, %arg4: memref<8x1xf32, #tpu.memory_space<vmem>>, %arg5: memref<2x256xbf16, #tpu.memory_space<vmem>>, %arg6: memref<1x1x2x2x8x256xf32, #tpu.memory_space<vmem>>, %arg7: memref<24x256xbf16, #tpu.memory_space<vmem>>) attributes {dimension_semantics = [#tpu.dimension_semantics<parallel>, #tpu.dimension_semantics<parallel>], iteration_bounds = array<i64: 2, 1>, scalar_prefetch = 0 : i64, scratch_operands = 1 : i64, tpu.core_type = #tpu.core_type<tc>, window_params = [{transform_indices = @transform_0, window_bounds = array<i64: 1, 1, 4, 290>}, {pipeline_mode = #tpu.pipeline_mode<synchronous>, transform_indices = @transform_1, window_bounds = array<i64: 2, 2, 8, 16>}, {pipeline_mode = #tpu.pipeline_mode<synchronous>, transform_indices = @transform_2, window_bounds = array<i64: 8, 1>}, {pipeline_mode = #tpu.pipeline_mode<synchronous>, transform_indices = @transform_3, window_bounds = array<i64: 2, 256>}, {transform_indices = @transform_4, window_bounds = array<i64: 1, 1, 2, 2, 8, 256>}]} {
    %c0 = arith.constant 0 : index
    %c0_0 = arith.constant 0 : index
    %0 = vector.load %arg4[%c0, %c0_0] : memref<8x1xf32, #tpu.memory_space<vmem>>, vector<8x1xf32>
    %c0_1 = arith.constant 0 : index
    %c0_2 = arith.constant 0 : index
    %1 = vector.load %arg5[%c0_1, %c0_2] : memref<2x256xbf16, #tpu.memory_space<vmem>>, vector<1x256xbf16>
    %c1 = arith.constant 1 : index
    %c0_3 = arith.constant 0 : index
    %2 = vector.load %arg5[%c1, %c0_3] : memref<2x256xbf16, #tpu.memory_space<vmem>>, vector<1x256xbf16>
    %c0_4 = arith.constant 0 : index
    %c0_5 = arith.constant 0 : index
    %c0_6 = arith.constant 0 : index
    %c0_7 = arith.constant 0 : index
    %3 = vector.load %arg2[%c0_4, %c0_5, %c0_6, %c0_7] : memref<1x1x4x290xbf16, #tpu.memory_space<vmem>>, vector<1x1x4x256xbf16>
    %4 = vector.shape_cast %3 : vector<1x1x4x256xbf16> to vector<4x256xbf16>
    %5 = vector.broadcast %1 : vector<1x256xbf16> to vector<4x256xbf16>
    %6 = arith.mulf %4, %5 : vector<4x256xbf16>
    %c0_8 = arith.constant 0 : index
    %c0_9 = arith.constant 0 : index
    %7 = vector.load %arg7[%c0_8, %c0_9] : memref<24x256xbf16, #tpu.memory_space<vmem>>, vector<4x256xbf16>
    tpu.vector_store %arg7[%c0_8, %c0_9], %6 {strides = array<i32>} : memref<24x256xbf16, #tpu.memory_space<vmem>>, vector<4x256xbf16>,
    %c0_10 = arith.constant 0 : index
    %c0_11 = arith.constant 0 : index
    %c0_12 = arith.constant 0 : index
    %c16 = arith.constant 16 : index
    %8 = vector.load %arg2[%c0_10, %c0_11, %c0_12, %c16] : memref<1x1x4x290xbf16, #tpu.memory_space<vmem>>, vector<1x1x4x256xbf16>
    %9 = vector.shape_cast %8 : vector<1x1x4x256xbf16> to vector<4x256xbf16>
    %10 = vector.broadcast %1 : vector<1x256xbf16> to vector<4x256xbf16>
    %11 = arith.mulf %9, %10 : vector<4x256xbf16>
    %c4 = arith.constant 4 : index
    %c0_13 = arith.constant 0 : index
    %12 = vector.load %arg7[%c4, %c0_13] : memref<24x256xbf16, #tpu.memory_space<vmem>>, vector<4x256xbf16>
    tpu.vector_store %arg7[%c4, %c0_13], %11 {strides = array<i32>} : memref<24x256xbf16, #tpu.memory_space<vmem>>, vector<4x256xbf16>,
    %c0_14 = arith.constant 0 : index
    %c0_15 = arith.constant 0 : index
    %c0_16 = arith.constant 0 : index
    %c1_17 = arith.constant 1 : index
    %13 = vector.load %arg2[%c0_14, %c0_15, %c0_16, %c1_17] : memref<1x1x4x290xbf16, #tpu.memory_space<vmem>>, vector<1x1x4x256xbf16>
    %14 = vector.shape_cast %13 : vector<1x1x4x256xbf16> to vector<4x256xbf16>
    %c8 = arith.constant 8 : index
    %c0_18 = arith.constant 0 : index
    %15 = vector.load %arg7[%c8, %c0_18] : memref<24x256xbf16, #tpu.memory_space<vmem>>, vector<4x256xbf16>
    tpu.vector_store %arg7[%c8, %c0_18], %14 {strides = array<i32>} : memref<24x256xbf16, #tpu.memory_space<vmem>>, vector<4x256xbf16>,
    %c0_19 = arith.constant 0 : index
    %c0_20 = arith.constant 0 : index
    %c0_21 = arith.constant 0 : index
    %c17 = arith.constant 17 : index
    %16 = vector.load %arg2[%c0_19, %c0_20, %c0_21, %c17] : memref<1x1x4x290xbf16, #tpu.memory_space<vmem>>, vector<1x1x4x256xbf16>
    %17 = vector.shape_cast %16 : vector<1x1x4x256xbf16> to vector<4x256xbf16>
    %c12 = arith.constant 12 : index
    %c0_22 = arith.constant 0 : index
    %18 = vector.load %arg7[%c12, %c0_22] : memref<24x256xbf16, #tpu.memory_space<vmem>>, vector<4x256xbf16>
    tpu.vector_store %arg7[%c12, %c0_22], %17 {strides = array<i32>} : memref<24x256xbf16, #tpu.memory_space<vmem>>, vector<4x256xbf16>,
    %c0_23 = arith.constant 0 : index
    %c0_24 = arith.constant 0 : index
    %c0_25 = arith.constant 0 : index
    %c2 = arith.constant 2 : index
    %19 = vector.load %arg2[%c0_23, %c0_24, %c0_25, %c2] : memref<1x1x4x290xbf16, #tpu.memory_space<vmem>>, vector<1x1x4x256xbf16>
    %20 = vector.shape_cast %19 : vector<1x1x4x256xbf16> to vector<4x256xbf16>
    %21 = vector.broadcast %2 : vector<1x256xbf16> to vector<4x256xbf16>
    %22 = arith.mulf %20, %21 : vector<4x256xbf16>
    %c16_26 = arith.constant 16 : index
    %c0_27 = arith.constant 0 : index
    %23 = vector.load %arg7[%c16_26, %c0_27] : memref<24x256xbf16, #tpu.memory_space<vmem>>, vector<4x256xbf16>
    tpu.vector_store %arg7[%c16_26, %c0_27], %22 {strides = array<i32>} : memref<24x256xbf16, #tpu.memory_space<vmem>>, vector<4x256xbf16>,
    %c0_28 = arith.constant 0 : index
    %c0_29 = arith.constant 0 : index
    %c0_30 = arith.constant 0 : index
    %c18 = arith.constant 18 : index
    %24 = vector.load %arg2[%c0_28, %c0_29, %c0_30, %c18] : memref<1x1x4x290xbf16, #tpu.memory_space<vmem>>, vector<1x1x4x256xbf16>
    %25 = vector.shape_cast %24 : vector<1x1x4x256xbf16> to vector<4x256xbf16>
    %26 = vector.broadcast %2 : vector<1x256xbf16> to vector<4x256xbf16>
    %27 = arith.mulf %25, %26 : vector<4x256xbf16>
    %c20 = arith.constant 20 : index
    %c0_31 = arith.constant 0 : index
    %28 = vector.load %arg7[%c20, %c0_31] : memref<24x256xbf16, #tpu.memory_space<vmem>>, vector<4x256xbf16>
    tpu.vector_store %arg7[%c20, %c0_31], %27 {strides = array<i32>} : memref<24x256xbf16, #tpu.memory_space<vmem>>, vector<4x256xbf16>,
    %c0_32 = arith.constant 0 : index
    %c0_33 = arith.constant 0 : index
    %c0_34 = arith.constant 0 : index
    %c0_35 = arith.constant 0 : index
    %29 = vector.load %arg3[%c0_32, %c0_33, %c0_34, %c0_35] : memref<2x2x8x16xbf16, #tpu.memory_space<vmem>>, vector<1x1x8x16xbf16>
    %30 = vector.shape_cast %29 : vector<1x1x8x16xbf16> to vector<8x16xbf16>
    %c0_36 = arith.constant 0 : index
    %c0_37 = arith.constant 0 : index
    %31 = vector.load %arg7[%c0_36, %c0_37] : memref<24x256xbf16, #tpu.memory_space<vmem>>, vector<16x256xbf16>
    %cst = arith.constant dense<0.000000e+00> : vector<8x256xf32>
    %32 = tpu.matmul %30, %31, %cst {dimension_numbers = #tpu.dot_dimension_numbers<[1], [0], [0], [1], [0, 0, 1, 1], [], []>} : vector<8x16xbf16>, vector<16x256xbf16>, vector<8x256xf32> -> vector<8x256xf32>
    %33 = vector.broadcast %0 : vector<8x1xf32> to vector<8x256xf32>
    %34 = arith.addf %32, %33 : vector<8x256xf32>
    %c0_38 = arith.constant 0 : index
    %c0_39 = arith.constant 0 : index
    %c0_40 = arith.constant 0 : index
    %c0_41 = arith.constant 0 : index
    %c0_42 = arith.constant 0 : index
    %c0_43 = arith.constant 0 : index
    %35 = vector.load %arg6[%c0_38, %c0_39, %c0_40, %c0_41, %c0_42, %c0_43] : memref<1x1x2x2x8x256xf32, #tpu.memory_space<vmem>>, vector<1x1x1x1x8x256xf32>
    %36 = vector.shape_cast %35 : vector<1x1x1x1x8x256xf32> to vector<8x256xf32>
    %37 = vector.shape_cast %34 : vector<8x256xf32> to vector<1x1x1x1x8x256xf32>
    tpu.vector_store %arg6[%c0_38, %c0_39, %c0_40, %c0_41, %c0_42, %c0_43], %37 {strides = array<i32>} : memref<1x1x2x2x8x256xf32, #tpu.memory_space<vmem>>, vector<1x1x1x1x8x256xf32>,
    %c0_44 = arith.constant 0 : index
    %c1_45 = arith.constant 1 : index
    %c0_46 = arith.constant 0 : index
    %c0_47 = arith.constant 0 : index
    %38 = vector.load %arg3[%c0_44, %c1_45, %c0_46, %c0_47] : memref<2x2x8x16xbf16, #tpu.memory_space<vmem>>, vector<1x1x8x16xbf16>
    %39 = vector.shape_cast %38 : vector<1x1x8x16xbf16> to vector<8x16xbf16>
    %c8_48 = arith.constant 8 : index
    %c0_49 = arith.constant 0 : index
    %40 = vector.load %arg7[%c8_48, %c0_49] : memref<24x256xbf16, #tpu.memory_space<vmem>>, vector<16x256xbf16>
    %cst_50 = arith.constant dense<0.000000e+00> : vector<8x256xf32>
    %41 = tpu.matmul %39, %40, %cst_50 {dimension_numbers = #tpu.dot_dimension_numbers<[1], [0], [0], [1], [0, 0, 1, 1], [], []>} : vector<8x16xbf16>, vector<16x256xbf16>, vector<8x256xf32> -> vector<8x256xf32>
    %42 = vector.broadcast %0 : vector<8x1xf32> to vector<8x256xf32>
    %43 = arith.addf %41, %42 : vector<8x256xf32>
    %c0_51 = arith.constant 0 : index
    %c0_52 = arith.constant 0 : index
    %c0_53 = arith.constant 0 : index
    %c1_54 = arith.constant 1 : index
    %c0_55 = arith.constant 0 : index
    %c0_56 = arith.constant 0 : index
    %44 = vector.load %arg6[%c0_51, %c0_52, %c0_53, %c1_54, %c0_55, %c0_56] : memref<1x1x2x2x8x256xf32, #tpu.memory_space<vmem>>, vector<1x1x1x1x8x256xf32>
    %45 = vector.shape_cast %44 : vector<1x1x1x1x8x256xf32> to vector<8x256xf32>
    %46 = vector.shape_cast %43 : vector<8x256xf32> to vector<1x1x1x1x8x256xf32>
    tpu.vector_store %arg6[%c0_51, %c0_52, %c0_53, %c1_54, %c0_55, %c0_56], %46 {strides = array<i32>} : memref<1x1x2x2x8x256xf32, #tpu.memory_space<vmem>>, vector<1x1x1x1x8x256xf32>,
    %c0_57 = arith.constant 0 : index
    %c0_58 = arith.constant 0 : index
    %c0_59 = arith.constant 0 : index
    %c16_60 = arith.constant 16 : index
    %47 = vector.load %arg2[%c0_57, %c0_58, %c0_59, %c16_60] : memref<1x1x4x290xbf16, #tpu.memory_space<vmem>>, vector<1x1x4x256xbf16>
    %48 = vector.shape_cast %47 : vector<1x1x4x256xbf16> to vector<4x256xbf16>
    %49 = vector.broadcast %1 : vector<1x256xbf16> to vector<4x256xbf16>
    %50 = arith.mulf %48, %49 : vector<4x256xbf16>
    %c0_61 = arith.constant 0 : index
    %c0_62 = arith.constant 0 : index
    %51 = vector.load %arg7[%c0_61, %c0_62] : memref<24x256xbf16, #tpu.memory_space<vmem>>, vector<4x256xbf16>
    tpu.vector_store %arg7[%c0_61, %c0_62], %50 {strides = array<i32>} : memref<24x256xbf16, #tpu.memory_space<vmem>>, vector<4x256xbf16>,
    %c0_63 = arith.constant 0 : index
    %c0_64 = arith.constant 0 : index
    %c0_65 = arith.constant 0 : index
    %c32 = arith.constant 32 : index
    %52 = vector.load %arg2[%c0_63, %c0_64, %c0_65, %c32] : memref<1x1x4x290xbf16, #tpu.memory_space<vmem>>, vector<1x1x4x256xbf16>
    %53 = vector.shape_cast %52 : vector<1x1x4x256xbf16> to vector<4x256xbf16>
    %54 = vector.broadcast %1 : vector<1x256xbf16> to vector<4x256xbf16>
    %55 = arith.mulf %53, %54 : vector<4x256xbf16>
    %c4_66 = arith.constant 4 : index
    %c0_67 = arith.constant 0 : index
    %56 = vector.load %arg7[%c4_66, %c0_67] : memref<24x256xbf16, #tpu.memory_space<vmem>>, vector<4x256xbf16>
    tpu.vector_store %arg7[%c4_66, %c0_67], %55 {strides = array<i32>} : memref<24x256xbf16, #tpu.memory_space<vmem>>, vector<4x256xbf16>,
    %c0_68 = arith.constant 0 : index
    %c0_69 = arith.constant 0 : index
    %c0_70 = arith.constant 0 : index
    %c17_71 = arith.constant 17 : index
    %57 = vector.load %arg2[%c0_68, %c0_69, %c0_70, %c17_71] : memref<1x1x4x290xbf16, #tpu.memory_space<vmem>>, vector<1x1x4x256xbf16>
    %58 = vector.shape_cast %57 : vector<1x1x4x256xbf16> to vector<4x256xbf16>
    %c8_72 = arith.constant 8 : index
    %c0_73 = arith.constant 0 : index
    %59 = vector.load %arg7[%c8_72, %c0_73] : memref<24x256xbf16, #tpu.memory_space<vmem>>, vector<4x256xbf16>
    tpu.vector_store %arg7[%c8_72, %c0_73], %58 {strides = array<i32>} : memref<24x256xbf16, #tpu.memory_space<vmem>>, vector<4x256xbf16>,
    %c0_74 = arith.constant 0 : index
    %c0_75 = arith.constant 0 : index
    %c0_76 = arith.constant 0 : index
    %c33 = arith.constant 33 : index
    %60 = vector.load %arg2[%c0_74, %c0_75, %c0_76, %c33] : memref<1x1x4x290xbf16, #tpu.memory_space<vmem>>, vector<1x1x4x256xbf16>
    %61 = vector.shape_cast %60 : vector<1x1x4x256xbf16> to vector<4x256xbf16>
    %c12_77 = arith.constant 12 : index
    %c0_78 = arith.constant 0 : index
    %62 = vector.load %arg7[%c12_77, %c0_78] : memref<24x256xbf16, #tpu.memory_space<vmem>>, vector<4x256xbf16>
    tpu.vector_store %arg7[%c12_77, %c0_78], %61 {strides = array<i32>} : memref<24x256xbf16, #tpu.memory_space<vmem>>, vector<4x256xbf16>,
    %c0_79 = arith.constant 0 : index
    %c0_80 = arith.constant 0 : index
    %c0_81 = arith.constant 0 : index
    %c18_82 = arith.constant 18 : index
    %63 = vector.load %arg2[%c0_79, %c0_80, %c0_81, %c18_82] : memref<1x1x4x290xbf16, #tpu.memory_space<vmem>>, vector<1x1x4x256xbf16>
    %64 = vector.shape_cast %63 : vector<1x1x4x256xbf16> to vector<4x256xbf16>
    %65 = vector.broadcast %2 : vector<1x256xbf16> to vector<4x256xbf16>
    %66 = arith.mulf %64, %65 : vector<4x256xbf16>
    %c16_83 = arith.constant 16 : index
    %c0_84 = arith.constant 0 : index
    %67 = vector.load %arg7[%c16_83, %c0_84] : memref<24x256xbf16, #tpu.memory_space<vmem>>, vector<4x256xbf16>
    tpu.vector_store %arg7[%c16_83, %c0_84], %66 {strides = array<i32>} : memref<24x256xbf16, #tpu.memory_space<vmem>>, vector<4x256xbf16>,
    %c0_85 = arith.constant 0 : index
    %c0_86 = arith.constant 0 : index
    %c0_87 = arith.constant 0 : index
    %c34 = arith.constant 34 : index
    %68 = vector.load %arg2[%c0_85, %c0_86, %c0_87, %c34] : memref<1x1x4x290xbf16, #tpu.memory_space<vmem>>, vector<1x1x4x256xbf16>
    %69 = vector.shape_cast %68 : vector<1x1x4x256xbf16> to vector<4x256xbf16>
    %70 = vector.broadcast %2 : vector<1x256xbf16> to vector<4x256xbf16>
    %71 = arith.mulf %69, %70 : vector<4x256xbf16>
    %c20_88 = arith.constant 20 : index
    %c0_89 = arith.constant 0 : index
    %72 = vector.load %arg7[%c20_88, %c0_89] : memref<24x256xbf16, #tpu.memory_space<vmem>>, vector<4x256xbf16>
    tpu.vector_store %arg7[%c20_88, %c0_89], %71 {strides = array<i32>} : memref<24x256xbf16, #tpu.memory_space<vmem>>, vector<4x256xbf16>,
    %c1_90 = arith.constant 1 : index
    %c0_91 = arith.constant 0 : index
    %c0_92 = arith.constant 0 : index
    %c0_93 = arith.constant 0 : index
    %73 = vector.load %arg3[%c1_90, %c0_91, %c0_92, %c0_93] : memref<2x2x8x16xbf16, #tpu.memory_space<vmem>>, vector<1x1x8x16xbf16>
    %74 = vector.shape_cast %73 : vector<1x1x8x16xbf16> to vector<8x16xbf16>
    %c0_94 = arith.constant 0 : index
    %c0_95 = arith.constant 0 : index
    %75 = vector.load %arg7[%c0_94, %c0_95] : memref<24x256xbf16, #tpu.memory_space<vmem>>, vector<16x256xbf16>
    %cst_96 = arith.constant dense<0.000000e+00> : vector<8x256xf32>
    %76 = tpu.matmul %74, %75, %cst_96 {dimension_numbers = #tpu.dot_dimension_numbers<[1], [0], [0], [1], [0, 0, 1, 1], [], []>} : vector<8x16xbf16>, vector<16x256xbf16>, vector<8x256xf32> -> vector<8x256xf32>
    %77 = vector.broadcast %0 : vector<8x1xf32> to vector<8x256xf32>
    %78 = arith.addf %76, %77 : vector<8x256xf32>
    %c0_97 = arith.constant 0 : index
    %c0_98 = arith.constant 0 : index
    %c1_99 = arith.constant 1 : index
    %c0_100 = arith.constant 0 : index
    %c0_101 = arith.constant 0 : index
    %c0_102 = arith.constant 0 : index
    %79 = vector.load %arg6[%c0_97, %c0_98, %c1_99, %c0_100, %c0_101, %c0_102] : memref<1x1x2x2x8x256xf32, #tpu.memory_space<vmem>>, vector<1x1x1x1x8x256xf32>
    %80 = vector.shape_cast %79 : vector<1x1x1x1x8x256xf32> to vector<8x256xf32>
    %81 = vector.shape_cast %78 : vector<8x256xf32> to vector<1x1x1x1x8x256xf32>
    tpu.vector_store %arg6[%c0_97, %c0_98, %c1_99, %c0_100, %c0_101, %c0_102], %81 {strides = array<i32>} : memref<1x1x2x2x8x256xf32, #tpu.memory_space<vmem>>, vector<1x1x1x1x8x256xf32>,
    %c1_103 = arith.constant 1 : index
    %c1_104 = arith.constant 1 : index
    %c0_105 = arith.constant 0 : index
    %c0_106 = arith.constant 0 : index
    %82 = vector.load %arg3[%c1_103, %c1_104, %c0_105, %c0_106] : memref<2x2x8x16xbf16, #tpu.memory_space<vmem>>, vector<1x1x8x16xbf16>
    %83 = vector.shape_cast %82 : vector<1x1x8x16xbf16> to vector<8x16xbf16>
    %c8_107 = arith.constant 8 : index
    %c0_108 = arith.constant 0 : index
    %84 = vector.load %arg7[%c8_107, %c0_108] : memref<24x256xbf16, #tpu.memory_space<vmem>>, vector<16x256xbf16>
    %cst_109 = arith.constant dense<0.000000e+00> : vector<8x256xf32>
    %85 = tpu.matmul %83, %84, %cst_109 {dimension_numbers = #tpu.dot_dimension_numbers<[1], [0], [0], [1], [0, 0, 1, 1], [], []>} : vector<8x16xbf16>, vector<16x256xbf16>, vector<8x256xf32> -> vector<8x256xf32>
    %86 = vector.broadcast %0 : vector<8x1xf32> to vector<8x256xf32>
    %87 = arith.addf %85, %86 : vector<8x256xf32>
    %c0_110 = arith.constant 0 : index
    %c0_111 = arith.constant 0 : index
    %c1_112 = arith.constant 1 : index
    %c1_113 = arith.constant 1 : index
    %c0_114 = arith.constant 0 : index
    %c0_115 = arith.constant 0 : index
    %88 = vector.load %arg6[%c0_110, %c0_111, %c1_112, %c1_113, %c0_114, %c0_115] : memref<1x1x2x2x8x256xf32, #tpu.memory_space<vmem>>, vector<1x1x1x1x8x256xf32>
    %89 = vector.shape_cast %88 : vector<1x1x1x1x8x256xf32> to vector<8x256xf32>
    %90 = vector.shape_cast %87 : vector<8x256xf32> to vector<1x1x1x1x8x256xf32>
    tpu.vector_store %arg6[%c0_110, %c0_111, %c1_112, %c1_113, %c0_114, %c0_115], %90 {strides = array<i32>} : memref<1x1x2x2x8x256xf32, #tpu.memory_space<vmem>>, vector<1x1x1x1x8x256xf32>,
    return
  }
  func.func @transform_0(%arg0: i32, %arg1: i32) -> (i32, i32, i32, i32) {
    %c0_i32 = arith.constant 0 : i32
    %c0_i32_0 = arith.constant 0 : i32
    %c0_i32_1 = arith.constant 0 : i32
    return %arg0, %arg1, %c0_i32, %c0_i32_0 : i32, i32, i32, i32
  }
  func.func @transform_1(%arg0: i32, %arg1: i32) -> (i32, i32, i32, i32) {
    %c0_i32 = arith.constant 0 : i32
    %c0_i32_0 = arith.constant 0 : i32
    %c0_i32_1 = arith.constant 0 : i32
    %c0_i32_2 = arith.constant 0 : i32
    %c0_i32_3 = arith.constant 0 : i32
    return %c0_i32, %c0_i32_0, %c0_i32_1, %c0_i32_2 : i32, i32, i32, i32
  }
  func.func @transform_2(%arg0: i32, %arg1: i32) -> (i32, i32) {
    %c0_i32 = arith.constant 0 : i32
    %c0_i32_0 = arith.constant 0 : i32
    %c0_i32_1 = arith.constant 0 : i32
    return %c0_i32, %c0_i32_0 : i32, i32
  }
  func.func @transform_3(%arg0: i32, %arg1: i32) -> (i32, i32) {
    %c0_i32 = arith.constant 0 : i32
    %c0_i32_0 = arith.constant 0 : i32
    %c0_i32_1 = arith.constant 0 : i32
    return %c0_i32, %c0_i32_0 : i32, i32
  }
  func.func @transform_4(%arg0: i32, %arg1: i32) -> (i32, i32, i32, i32, i32, i32) {
    %c0_i32 = arith.constant 0 : i32
    %c0_i32_0 = arith.constant 0 : i32
    %c0_i32_1 = arith.constant 0 : i32
    %c0_i32_2 = arith.constant 0 : i32
    %c0_i32_3 = arith.constant 0 : i32
    return %arg0, %arg1, %c0_i32, %c0_i32_0, %c0_i32_1, %c0_i32_2 : i32, i32, i32, i32, i32, i32
  }
}

</mosaic_0001>

<llo_original>
// kernel: upsample_conv.1
$region0: #{upsample_conv.1}
  #allocation0 [shape = 'u32[]', space=smem, size = 0x4, offset = 0x4, fixed_abs, tag = 'smem constant byte address 0x4 - core index']
  #allocation1 [shape = 'u32[144,128]{1,0:T(1,128)}', space=vmem, size = 0x12000, scoped, tag = 'internal scratch']
  #allocation2 [shape = 'bf16[24,256]{1,0:T(8,128)(2,1)}', space=vmem, size = 0x3000, scoped, tag = 'scratch operand']
  %s0 = inlined_call_operand.vmem [shape: bf16[2,1,4,290], index: 0, kind: input, shape index: {}]
  %s1 = inlined_call_operand.vmem [shape: bf16[2,2,8,16], index: 1, kind: input, shape index: {}]
  %s2 = inlined_call_operand.vmem [shape: f32[8,1], index: 2, kind: input, shape index: {}]
  %s3 = inlined_call_operand.vmem [shape: bf16[2,256], index: 3, kind: input, shape index: {}]
  %s4 = inlined_call_operand.vmem [shape: f32[2,1,2,2,8,256], index: 4, kind: output, shape index: {}]
  %s5 = sld [smem:[#allocation0]]
  $region49: #{upsample_conv.1} parent=0
    _
  %s7 = ssub.s32 1, %s5
  %s8 = scalar_select 0, %s7, %s5
  loop: start=0, step=1, limit=4
  $region2: #{upsample_conv.1} parent=0 // loop_pre_header
    _
  $region3: #{upsample_conv.1} parent=0 // loop_header
    %s10 = sphi 0, %s14
    %p11 = scmp.ge.s32.totalorder %s10, 4
    %s17 = sphi 0, %s29
    %s18 = sphi 0, %s25
    %s19 = sphi 0, %s17
    %s20 = sphi 0, %s18
    %s21 = sphi 0, %s19
    %s22 = sphi 0, %s20
    %s34 = sphi 0, %s36
    %s37 = sphi 0, %s34
    %s38 = sphi 0, %s37
    %s54 = sphi 0, %s38
    %s58 = sphi 0, %s58
    %s60 = sphi 0, %s58
    %s61 = sphi 0, %s60
    %s75 = sphi 0, %s61
    %s79 = sphi 0, %s79
    %s81 = sphi 0, %s79
    %s82 = sphi 0, %s81
    %s96 = sphi 0, %s82
    %s100 = sphi 0, %s100
    %s102 = sphi 0, %s100
    %s103 = sphi 0, %s102
    %s117 = sphi 0, %s103
    %s125 = sphi 0, %s127
    %s128 = sphi 0, %s125
    %s129 = sphi 0, %s128
    %s145 = sphi 0, %s129
  $region4: #{upsample_conv.1} parent=0 // loop_header_branch
    %13 = sbr.rel (%p11) target = $region8
  $region5: #{upsample_conv.1} parent=0 // loop_body
    %s15 = ssub.s32 %s10, 1
    %s16 = ssub.s32 %s10, 2
    %s23 = sadd.s32 1, %s18
    %p24 = scmp.ge.s32.totalorder %s23, 1
    %s25 = scalar_select %p24, 0, %s23
    %s26 = sadd.s32 1, %s17
    %s27 = scalar_select %p24, %s26, %s17
    %p28 = scmp.ge.s32.totalorder %s27, 2
    %s29 = scalar_select %p28, 0, %s27
    %s30 = ssub.s32 %s17, %s29
    %s31 = ssub.s32 %s18, %s25
    %s32 = sor.u32 %s30, %s31
    %p33 = scmp.eq.s32.totalorder %s32, 0
    %s35 = sadd.s32 %s34, 1
    %s36 = scalar_select %p33, %s34, %s35
    %p39 = pneg %p33
    %p40 = scmp.eq.s32.totalorder %s10, 1
    %p41 = por %p39, %p40
    %p42 = scmp.ne.s32.totalorder %s34, %s37
    %p43 = scmp.eq.s32.totalorder %s10, 0
    %p44 = por %p42, %p43
    %p45 = scmp.ne.s32.totalorder %s34, %s37
    %p46 = scmp.eq.s32.totalorder %s15, 1
    %p47 = por %p45, %p46
    %p48 = scmp.ne.s32.totalorder %s37, %s38
    %p49 = scmp.eq.s32.totalorder %s15, 0
    %p50 = por %p48, %p49
    %p51 = scmp.ne.s32.totalorder %s37, %s38
    %p52 = scmp.eq.s32.totalorder %s16, 1
    %p53 = por %p51, %p52
    %p55 = scmp.ne.s32.totalorder %s38, %s54
    %p56 = scmp.eq.s32.totalorder %s16, 0
    %p57 = por %p55, %p56
    %s59 = sadd.s32 %s58, 1
    %p62 = scmp.eq.s32.totalorder %s10, 1
    %p63 = scmp.ne.s32.totalorder %s58, %s60
    %p64 = scmp.eq.s32.totalorder %s10, 0
    %p65 = por %p63, %p64
    %p66 = scmp.ne.s32.totalorder %s58, %s60
    %p67 = scmp.eq.s32.totalorder %s15, 1
    %p68 = por %p66, %p67
    %p69 = scmp.ne.s32.totalorder %s60, %s61
    %p70 = scmp.eq.s32.totalorder %s15, 0
    %p71 = por %p69, %p70
    %p72 = scmp.ne.s32.totalorder %s60, %s61
    %p73 = scmp.eq.s32.totalorder %s16, 1
    %p74 = por %p72, %p73
    %p76 = scmp.ne.s32.totalorder %s61, %s75
    %p77 = scmp.eq.s32.totalorder %s16, 0
    %p78 = por %p76, %p77
    %s80 = sadd.s32 %s79, 1
    %p83 = scmp.eq.s32.totalorder %s10, 1
    %p84 = scmp.ne.s32.totalorder %s79, %s81
    %p85 = scmp.eq.s32.totalorder %s10, 0
    %p86 = por %p84, %p85
    %p87 = scmp.ne.s32.totalorder %s79, %s81
    %p88 = scmp.eq.s32.totalorder %s15, 1
    %p89 = por %p87, %p88
    %p90 = scmp.ne.s32.totalorder %s81, %s82
    %p91 = scmp.eq.s32.totalorder %s15, 0
    %p92 = por %p90, %p91
    %p93 = scmp.ne.s32.totalorder %s81, %s82
    %p94 = scmp.eq.s32.totalorder %s16, 1
    %p95 = por %p93, %p94
    %p97 = scmp.ne.s32.totalorder %s82, %s96
    %p98 = scmp.eq.s32.totalorder %s16, 0
    %p99 = por %p97, %p98
    %s101 = sadd.s32 %s100, 1
    %p104 = scmp.eq.s32.totalorder %s10, 1
    %p105 = scmp.ne.s32.totalorder %s100, %s102
    %p106 = scmp.eq.s32.totalorder %s10, 0
    %p107 = por %p105, %p106
    %p108 = scmp.ne.s32.totalorder %s100, %s102
    %p109 = scmp.eq.s32.totalorder %s15, 1
    %p110 = por %p108, %p109
    %p111 = scmp.ne.s32.totalorder %s102, %s103
    %p112 = scmp.eq.s32.totalorder %s15, 0
    %p113 = por %p111, %p112
    %p114 = scmp.ne.s32.totalorder %s102, %s103
    %p115 = scmp.eq.s32.totalorder %s16, 1
    %p116 = por %p114, %p115
    %p118 = scmp.ne.s32.totalorder %s103, %s117
    %p119 = scmp.eq.s32.totalorder %s16, 0
    %p120 = por %p118, %p119
    %s121 = ssub.s32 %s17, %s29
    %s122 = ssub.s32 %s18, %s25
    %s123 = sor.u32 %s121, %s122
    %p124 = scmp.eq.s32.totalorder %s123, 0
    %s126 = sadd.s32 %s125, 1
    %s127 = scalar_select %p124, %s125, %s126
    %p130 = pneg %p124
    %p131 = scmp.eq.s32.totalorder %s10, 1
    %p132 = por %p130, %p131
    %p133 = scmp.ne.s32.totalorder %s125, %s128
    %p134 = scmp.eq.s32.totalorder %s10, 0
    %p135 = por %p133, %p134
    %p136 = scmp.ne.s32.totalorder %s125, %s128
    %p137 = scmp.eq.s32.totalorder %s15, 1
    %p138 = por %p136, %p137
    %p139 = scmp.ne.s32.totalorder %s128, %s129
    %p140 = scmp.eq.s32.totalorder %s15, 0
    %p141 = por %p139, %p140
    %p142 = scmp.ne.s32.totalorder %s128, %s129
    %p143 = scmp.eq.s32.totalorder %s16, 1
    %p144 = por %p142, %p143
    %p146 = scmp.ne.s32.totalorder %s129, %s145
    %p147 = scmp.eq.s32.totalorder %s16, 0
    %p148 = por %p146, %p147
    %p149 = scmp.le.s32.totalorder 1, %s10
    %p150 = scmp.lt.s32.totalorder %s10, 3
    %p151 = pnand %p149, %p150
    %p152 = pneg %p151
    // Predicated region
    $region9: #{upsample_conv.1} parent=5 // pred_check
      _
    $region10: #{upsample_conv.1} parent=5 // pred_check_branch
      %154 = sbr.rel (%p151) target = $region12
    $region11: #{upsample_conv.1} parent=5 // pred_region
      %s155 = ssub.s32 %s10, 1
      // Predicated region
      $region13: #{upsample_conv.1} parent=11 // pred_check
        %p156 = pneg %p71
      $region14: #{upsample_conv.1} parent=11 // pred_check_branch
        %158 = sbr.rel (%p156) target = $region16
      $region15: #{upsample_conv.1} parent=11 // pred_region
        _
      $region16: #{upsample_conv.1} parent=11 // pred_fallthru
        _
      // Predicated region
      $region17: #{upsample_conv.1} parent=11 // pred_check
        %p159 = pneg %p92
      $region18: #{upsample_conv.1} parent=11 // pred_check_branch
        %161 = sbr.rel (%p159) target = $region20
      $region19: #{upsample_conv.1} parent=11 // pred_region
        _
      $region20: #{upsample_conv.1} parent=11 // pred_fallthru
        _
      // Predicated region
      $region21: #{upsample_conv.1} parent=11 // pred_check
        %p162 = pneg %p113
      $region22: #{upsample_conv.1} parent=11 // pred_check_branch
        %164 = sbr.rel (%p162) target = $region24
      $region23: #{upsample_conv.1} parent=11 // pred_region
        _
      $region24: #{upsample_conv.1} parent=11 // pred_fallthru
        _
    $region12: #{upsample_conv.1} parent=5 // pred_fallthru
      _
    %p165 = scmp.lt.s32.totalorder %s10, 2
    // Predicated region
    $region25: #{upsample_conv.1} parent=5 // pred_check
      %p166 = pneg %p165
    $region26: #{upsample_conv.1} parent=5 // pred_check_branch
      %168 = sbr.rel (%p166) target = $region28
    $region27: #{upsample_conv.1} parent=5 // pred_region
      // Predicated region
      $region29: #{upsample_conv.1} parent=27 // pred_check
        %p169 = pneg %p44
      $region30: #{upsample_conv.1} parent=27 // pred_check_branch
        %171 = sbr.rel (%p169) target = $region32
      $region31: #{upsample_conv.1} parent=27 // pred_region
        %p172 = scmp.lt.s32.totalorder %s17, 1
        %s173 = scalar_select %p172, %s17, 1
        %p174 = scmp.lt.s32.totalorder %s18, 0
        %s175 = scalar_select %p174, %s18, 0
        %s176 = smul.addr %s175, 3
        %s177 = smul.addr %s173, 3
        %s178 = sadd.s32 %s176, %s177
        %s179 = smul.addr %s178, 2
        %s180 = scalar_lea.vmem %s0, %s179
      $region32: #{upsample_conv.1} parent=27 // pred_fallthru
        _
    $region28: #{upsample_conv.1} parent=5 // pred_fallthru
      _
    %p181 = scmp.le.s32.totalorder 1, %s10
    %p182 = scmp.lt.s32.totalorder %s10, 3
    %p183 = pnand %p181, %p182
    %p184 = pneg %p183
    // Predicated region
    $region33: #{upsample_conv.1} parent=5 // pred_check
      _
    $region34: #{upsample_conv.1} parent=5 // pred_check_branch
      %186 = sbr.rel (%p183) target = $region36
    $region35: #{upsample_conv.1} parent=5 // pred_region
      %s187 = ssub.s32 %s10, 1
      %p188 = scmp.lt.s32.totalorder %s19, 1
      %s189 = scalar_select %p188, %s19, 1
      %p190 = scmp.lt.s32.totalorder %s20, 0
      %s191 = scalar_select %p190, %s20, 0
      %s192 = smul.addr %s191, 3
      %s193 = smul.addr %s189, 3
      %s194 = sadd.s32 %s192, %s193
      %s195 = smul.addr %s194, 2
      %s196 = scalar_lea.vmem %s0, %s195
      %p197 = pneg %p50
      %p198 = pneg %p47
      %p199 = pneg %p71
      %p200 = pneg %p68
      %p201 = pneg %p92
      %p202 = pneg %p89
      %p203 = pneg %p113
      %p204 = pneg %p110
      %p205 = pneg %p141
      %p206 = pneg %p138
      %p207 = scmp.lt.s32.totalorder %s19, 1
      %s208 = scalar_select %p207, %s19, 1
      %p209 = scmp.lt.s32.totalorder %s20, 0
      %s210 = scalar_select %p209, %s20, 0
      %s211 = smul.addr %s210, 8
      %s212 = smul.addr %s208, 8
      %s213 = sadd.s32 %s211, %s212
      %s214 = smul.addr %s213, 8
      %s215 = scalar_lea.vmem %s4, %s214
      %p216 = scmp.lt.s32.totalorder %s19, 1
      %s217 = scalar_select %p216, %s19, 1
      %p218 = scmp.lt.s32.totalorder %s20, 0
      %s219 = scalar_select %p218, %s20, 0
      %s220 = smul.addr %s219, 3
      %s221 = smul.addr %s217, 3
      %s222 = sadd.s32 %s220, %s221
      %s223 = smul.addr %s222, 2
      %s224 = scalar_lea.vmem %s0, %s223
      %p225 = scmp.lt.s32.totalorder %s19, 1
      %s226 = scalar_select %p225, %s19, 1
      %p227 = scmp.lt.s32.totalorder %s20, 0
      %s228 = scalar_select %p227, %s20, 0
      %s229 = smul.addr %s228, 8
      %s230 = smul.addr %s226, 8
      %s231 = sadd.s32 %s229, %s230
      %s232 = smul.addr %s231, 8
      %s233 = scalar_lea.vmem %s4, %s232
      %v235 = vld [vmem:[%s2] sm:$0xff]
      %v236 = vld [vmem:[%s3] sm:$0x3]
      %v237 = vld [vmem:[%s224] sm:$0xf]
      %v240 = vunpack.c.l.s4 1966171168
      %v241 = vunpack.c.0.s8 %v240
      %v242 = vlaneseq
      %v243 = vshrl.u32 %v242, 7
      %v244 = vsub.s32 %v241, %v243
      %v245 = vrot.slane %v236, %v244
      %v246 = vcombine.high %v245, %v245
      %v248 = vunpack.c.l.s4 1966171168
      %v249 = vunpack.c.0.s8 %v248
      %v250 = vlaneseq
      %v251 = vshrl.u32 %v250, 7
      %v252 = vsub.s32 %v249, %v251
      %v253 = vrot.slane %v245, %v252
      %v255 = vunpack.c.l.s4 1966171168
      %v256 = vunpack.c.0.s8 %v255
      %v257 = vlaneseq
      %v258 = vshrl.u32 %v257, 7
      %v259 = vsub.s32 %v256, %v258
      %v260 = vrot.slane %v246, %v259
      %v262 = vpack.i.b16 %v253, %v253
      %v264 = vlaneseq
      %v265 = vshrl.u32 %v264, 7
      %v266 = vsub.s32 0, %v265
      %v267 = vrot.slane %v262, %v266
      %v269 = vpack.i.b16 %v260, %v260
      %v271 = vlaneseq
      %v272 = vshrl.u32 %v271, 7
      %v273 = vsub.s32 0, %v272
      %v274 = vrot.slane %v269, %v273
      %v277 = vcombine.low %v267, %v274
      %v279 = vunpack.c.l.s4 1983009808
      %v280 = vunpack.c.0.s8 %v279
      %v281 = vlaneseq
      %v282 = vshrl.u32 %v281, 7
      %v283 = vsub.s32 %v280, %v282
      %v284 = vrot.slane %v277, %v283
      %v286 = vmul.bf16 %v237, %v284
      %v289 = vunpack.c.l.s4 1983009808
      %v290 = vunpack.c.0.s8 %v289
      %v291 = vlaneseq
      %v292 = vshrl.u32 %v291, 7
      %v293 = vsub.s32 %v290, %v292
      %v294 = vrot.slane %v286, %v293
      %296 = vst [vmem:[#allocation2] sm:$0x33] %v294
      %v297 = vld [vmem:[%s224] sm:$0x3f]
      %298 = vrot.lane.b32.xlu0 %v284, 16
      %v299 = vpop.permute.xlu0 %298
      %v300 = vrot.slane %v299, 6
      %vm301 = vcmask 130048
      %v302 = vsel %vm301, %v300, %v299
      %v304 = vmul.bf16 %v297, %v302
      %v306 = vcombine.low %v304, %v304
      %v308 = vunpack.c.l.s4 1983009808
      %v309 = vunpack.c.0.s8 %v308
      %v310 = vlaneseq
      %v311 = vshrl.u32 %v310, 7
      %v312 = vsub.s32 %v309, %v311
      %v313 = vrot.slane %v306, %v312
      %v315 = vunpack.c.l.s4 1983009808
      %v316 = vunpack.c.0.s8 %v315
      %v317 = vlaneseq
      %v318 = vshrl.u32 %v317, 7
      %v319 = vsub.s32 %v316, %v318
      %v320 = vrot.slane %v304, %v319
      %321 = vrot.lane.b32.xlu0 %v313, 112
      %v322 = vpop.permute.xlu0 %321
      %323 = vrot.lane.b32.xlu0 %v320, 112
      %v324 = vpop.permute.xlu0 %323
      %v325 = vrot.slane %v322, 4
      %v326 = vrot.slane %v324, 4
      %vm327 = vcmask 1043456
      %v328 = vsel %vm327, %v325, %v326
      %vm329 = vcmask 916480
      %v330 = vsel %vm329, %v322, %v328
      %332 = vst [vmem:[#allocation2] sm:$0xcc] %v330
      %v333 = vld [vmem:[%s224] sm:$0x3f]
      %v335 = vcombine.high %v333, %v333
      %v337 = vunpack.c.l.s4 1983009808
      %v338 = vunpack.c.0.s8 %v337
      %v339 = vlaneseq
      %v340 = vshrl.u32 %v339, 7
      %v341 = vsub.s32 %v338, %v340
      %v342 = vrot.slane %v333, %v341
      %v344 = vunpack.c.l.s4 1983009808
      %v345 = vunpack.c.0.s8 %v344
      %v346 = vlaneseq
      %v347 = vshrl.u32 %v346, 7
      %v348 = vsub.s32 %v345, %v347
      %v349 = vrot.slane %v335, %v348
      %350 = vrot.lane.b32.xlu0 %v342, 127
      %v351 = vpop.permute.xlu0 %350
      %352 = vrot.lane.b32.xlu0 %v349, 127
      %v353 = vpop.permute.xlu0 %352
      %v354 = vrot.slane %v351, 4
      %v355 = vrot.slane %v353, 4
      %v356 = vsel %vm327, %v354, %v355
      %vm357 = vcmask 1039360
      %v358 = vsel %vm357, %v351, %v356
      %360 = vst [vmem:[#allocation2 + $0x8] sm:$0x33] %v358
      %v361 = vld [vmem:[%s224] sm:$0x3f]
      %v363 = vcombine.low %v361, %v361
      %v365 = vunpack.c.l.s4 1983009808
      %v366 = vunpack.c.0.s8 %v365
      %v367 = vlaneseq
      %v368 = vshrl.u32 %v367, 7
      %v369 = vsub.s32 %v366, %v368
      %v370 = vrot.slane %v363, %v369
      %v372 = vunpack.c.l.s4 1983009808
      %v373 = vunpack.c.0.s8 %v372
      %v374 = vlaneseq
      %v375 = vshrl.u32 %v374, 7
      %v376 = vsub.s32 %v373, %v375
      %v377 = vrot.slane %v361, %v376
      %378 = vrot.lane.b32.xlu0 %v370, 111
      %v379 = vpop.permute.xlu0 %378
      %380 = vrot.lane.b32.xlu0 %v377, 111
      %v381 = vpop.permute.xlu0 %380
      %v382 = vrot.slane %v379, 4
      %v383 = vrot.slane %v381, 4
      %v384 = vsel %vm327, %v382, %v383
      %vm385 = vcmask 908288
      %v386 = vsel %vm385, %v379, %v384
      %388 = vst [vmem:[#allocation2 + $0x8] sm:$0xcc] %v386
      %v389 = vld [vmem:[%s224] sm:$0x3f]
      %v390 = vshrl.u32 %v253, 16
      %v391 = vpack.i.b16 %v390, %v390
      %v393 = vlaneseq
      %v394 = vshrl.u32 %v393, 7
      %v395 = vsub.s32 0, %v394
      %v396 = vrot.slane %v391, %v395
      %v397 = vshrl.u32 %v260, 16
      %v398 = vpack.i.b16 %v397, %v397
      %v400 = vlaneseq
      %v401 = vshrl.u32 %v400, 7
      %v402 = vsub.s32 0, %v401
      %v403 = vrot.slane %v398, %v402
      %v406 = vcombine.low %v396, %v403
      %v408 = vunpack.c.l.s4 1983009808
      %v409 = vunpack.c.0.s8 %v408
      %v410 = vlaneseq
      %v411 = vshrl.u32 %v410, 7
      %v412 = vsub.s32 %v409, %v411
      %v413 = vrot.slane %v406, %v412
      %414 = vrot.lane.b32.xlu0 %v413, 2
      %v415 = vpop.permute.xlu0 %414
      %v416 = vrot.slane %v415, 6
      %vm417 = vcmask 15360
      %v418 = vsel %vm417, %v416, %v415
      %v420 = vmul.bf16 %v389, %v418
      %v422 = vcombine.high %v420, %v420
      %v424 = vunpack.c.l.s4 1983009808
      %v425 = vunpack.c.0.s8 %v424
      %v426 = vlaneseq
      %v427 = vshrl.u32 %v426, 7
      %v428 = vsub.s32 %v425, %v427
      %v429 = vrot.slane %v420, %v428
      %v431 = vunpack.c.l.s4 1983009808
      %v432 = vunpack.c.0.s8 %v431
      %v433 = vlaneseq
      %v434 = vshrl.u32 %v433, 7
      %v435 = vsub.s32 %v432, %v434
      %v436 = vrot.slane %v422, %v435
      %437 = vrot.lane.b32.xlu0 %v429, 126
      %v438 = vpop.permute.xlu0 %437
      %439 = vrot.lane.b32.xlu0 %v436, 126
      %v440 = vpop.permute.xlu0 %439
      %v441 = vrot.slane %v438, 4
      %v442 = vrot.slane %v440, 4
      %v443 = vsel %vm327, %v441, %v442
      %vm444 = vcmask 1031168
      %v445 = vsel %vm444, %v438, %v443
      %447 = vst [vmem:[#allocation2 + $0x10] sm:$0x33] %v445
      %v448 = vld [vmem:[%s224] sm:$0x3f]
      %449 = vrot.lane.b32.xlu0 %v413, 18
      %v450 = vpop.permute.xlu0 %449
      %v451 = vrot.slane %v450, 6
      %vm452 = vcmask 146432
      %v453 = vsel %vm452, %v451, %v450
      %v455 = vmul.bf16 %v448, %v453
      %v457 = vcombine.low %v455, %v455
      %v459 = vunpack.c.l.s4 1983009808
      %v460 = vunpack.c.0.s8 %v459
      %v461 = vlaneseq
      %v462 = vshrl.u32 %v461, 7
      %v463 = vsub.s32 %v460, %v462
      %v464 = vrot.slane %v457, %v463
      %v466 = vunpack.c.l.s4 1983009808
      %v467 = vunpack.c.0.s8 %v466
      %v468 = vlaneseq
      %v469 = vshrl.u32 %v468, 7
      %v470 = vsub.s32 %v467, %v469
      %v471 = vrot.slane %v455, %v470
      %472 = vrot.lane.b32.xlu0 %v464, 110
      %v473 = vpop.permute.xlu0 %472
      %474 = vrot.lane.b32.xlu0 %v471, 110
      %v475 = vpop.permute.xlu0 %474
      %v476 = vrot.slane %v473, 4
      %v477 = vrot.slane %v475, 4
      %v478 = vsel %vm327, %v476, %v477
      %vm479 = vcmask 900096
      %v480 = vsel %vm479, %v473, %v478
      %482 = vst [vmem:[#allocation2 + $0x10] sm:$0xcc] %v480
      %v483 = vld [vmem:[%s1] sm:$0xf]
      %v484 = vld [vmem:[#allocation2] sm:$0xff]
      %v485 = vld [vmem:[#allocation2 + $0x8] sm:$0xff]
      %487 = vset.pattern.permute.xlu0 0
      %488 = vperm.xlu0 %487, %v235
      %v489 = vpop.permute.xlu0 %488
      %v493 = vunpack.c.l.b16 %v484
      %v494 = vunpack.c.h.b16 %v484
      %v495 = vunpack.c.l.b16 %v485
      %v496 = vunpack.c.h.b16 %v485
      %v497 = vpack.c.b16 %v495, %v493
      %v498 = vpack.c.b16 %v496, %v494
      %vm501 = vcmask 130048
      %v503 = vsel %vm501, %v483, 0
      %505 = vmatprep.subr.bf16.mxu0 %v498
      %506 = vmatpush1.bf16.msra.mxu0 %v497
      %507 = vmatprep.subr.bf16.mxu0 0
      %508 = vmatpush1.bf16.msra.mxu0 0
      %509 = vmatprep.subr.bf16.mxu0 0
      %510 = vmatpush1.bf16.msra.mxu0 0
      %511 = vmatprep.subr.bf16.mxu0 0
      %512 = vmatpush1.bf16.msra.mxu0 0
      %513 = vmatprep.subr.bf16.mxu0 0
      %514 = vmatpush1.bf16.msra.mxu0 0
      %515 = vmatprep.subr.bf16.mxu0 0
      %516 = vmatpush1.bf16.msra.mxu0 0
      %517 = vmatprep.subr.bf16.mxu0 0
      %518 = vmatpush1.bf16.msra.mxu0 0
      %519 = vmatprep.subr.bf16.mxu0 0
      %520 = vmatpush1.bf16.msra.mxu0 0
      %521 = vmatprep.subr.bf16.mxu0 0
      %522 = vmatpush1.bf16.msra.mxu0 0
      %523 = vmatprep.subr.bf16.mxu0 0
      %524 = vmatpush1.bf16.msra.mxu0 0
      %525 = vmatprep.subr.bf16.mxu0 0
      %526 = vmatpush1.bf16.msra.mxu0 0
      %527 = vmatprep.subr.bf16.mxu0 0
      %528 = vmatpush1.bf16.msra.mxu0 0
      %529 = vmatprep.subr.bf16.mxu0 0
      %530 = vmatpush1.bf16.msra.mxu0 0
      %531 = vmatprep.subr.bf16.mxu0 0
      %532 = vmatpush1.bf16.msra.mxu0 0
      %533 = vmatprep.subr.bf16.mxu0 0
      %534 = vmatpush1.bf16.msra.mxu0 0
      %535 = vmatprep.subr.bf16.mxu0 0
      %536 = vmatpush1.bf16.msra.mxu0 0
      %537 = vmatprep.mubr.bf16.mxu0 0
      %538 = vmatmul.mubr.bf16.gmra.mrb[0].mxu0 %v503
      %v539 = vpop.f32.mrb[0].mxu0
      %v540 = vadd.f32 %v489, %v539
      %v541 = vpop.f32.mrb[0].mxu0
      %v542 = vadd.f32 %v489, %v541
      %v543 = vpop.f32.mrb[0].mxu0
      %v544 = vpop.f32.mrb[0].mxu0
      %545 = vdwg.mxu0
      %546 = vst [vmem:[%s233] sm:$0xff] %v540
      %547 = vst [vmem:[%s233 + $0x8] sm:$0xff] %v542
      %s548 = scalar_lea.vmem %s1, 4
      %v549 = vld [vmem:[%s548] sm:$0xf]
      %v550 = vld [vmem:[#allocation2 + $0x8] sm:$0xff]
      %v551 = vld [vmem:[#allocation2 + $0x10] sm:$0xff]
      %v554 = vunpack.c.l.b16 %v550
      %v555 = vunpack.c.h.b16 %v550
      %v556 = vunpack.c.l.b16 %v551
      %v557 = vunpack.c.h.b16 %v551
      %v558 = vpack.c.b16 %v556, %v554
      %v559 = vpack.c.b16 %v557, %v555
      %v563 = vsel %vm501, %v549, 0
      %565 = vmatprep.subr.bf16.mxu0 %v559
      %566 = vmatpush1.bf16.msra.mxu0 %v558
      %567 = vmatprep.subr.bf16.mxu0 0
      %568 = vmatpush1.bf16.msra.mxu0 0
      %569 = vmatprep.subr.bf16.mxu0 0
      %570 = vmatpush1.bf16.msra.mxu0 0
      %571 = vmatprep.subr.bf16.mxu0 0
      %572 = vmatpush1.bf16.msra.mxu0 0
      %573 = vmatprep.subr.bf16.mxu0 0
      %574 = vmatpush1.bf16.msra.mxu0 0
      %575 = vmatprep.subr.bf16.mxu0 0
      %576 = vmatpush1.bf16.msra.mxu0 0
      %577 = vmatprep.subr.bf16.mxu0 0
      %578 = vmatpush1.bf16.msra.mxu0 0
      %579 = vmatprep.subr.bf16.mxu0 0
      %580 = vmatpush1.bf16.msra.mxu0 0
      %581 = vmatprep.subr.bf16.mxu0 0
      %582 = vmatpush1.bf16.msra.mxu0 0
      %583 = vmatprep.subr.bf16.mxu0 0
      %584 = vmatpush1.bf16.msra.mxu0 0
      %585 = vmatprep.subr.bf16.mxu0 0
      %586 = vmatpush1.bf16.msra.mxu0 0
      %587 = vmatprep.subr.bf16.mxu0 0
      %588 = vmatpush1.bf16.msra.mxu0 0
      %589 = vmatprep.subr.bf16.mxu0 0
      %590 = vmatpush1.bf16.msra.mxu0 0
      %591 = vmatprep.subr.bf16.mxu0 0
      %592 = vmatpush1.bf16.msra.mxu0 0
      %593 = vmatprep.subr.bf16.mxu0 0
      %594 = vmatpush1.bf16.msra.mxu0 0
      %595 = vmatprep.subr.bf16.mxu0 0
      %596 = vmatpush1.bf16.msra.mxu0 0
      %597 = vmatprep.mubr.bf16.mxu0 0
      %598 = vmatmul.mubr.bf16.gmra.mrb[0].mxu0 %v563
      %v599 = vpop.f32.mrb[0].mxu0
      %v600 = vadd.f32 %v489, %v599
      %v601 = vpop.f32.mrb[0].mxu0
      %v602 = vadd.f32 %v489, %v601
      %v603 = vpop.f32.mrb[0].mxu0
      %v604 = vpop.f32.mrb[0].mxu0
      %605 = vdwg.mxu0
      %s606 = scalar_lea.vmem %s233, 16
      %607 = vst [vmem:[%s606] sm:$0xff] %v600
      %608 = vst [vmem:[%s606 + $0x8] sm:$0xff] %v602
      %v609 = vld [vmem:[%s224] sm:$0x3f]
      %v610 = vmul.bf16 %v609, %v302
      %v612 = vcombine.high %v610, %v610
      %v614 = vunpack.c.l.s4 1983009808
      %v615 = vunpack.c.0.s8 %v614
      %v616 = vlaneseq
      %v617 = vshrl.u32 %v616, 7
      %v618 = vsub.s32 %v615, %v617
      %v619 = vrot.slane %v610, %v618
      %v621 = vunpack.c.l.s4 1983009808
      %v622 = vunpack.c.0.s8 %v621
      %v623 = vlaneseq
      %v624 = vshrl.u32 %v623, 7
      %v625 = vsub.s32 %v622, %v624
      %v626 = vrot.slane %v612, %v625
      %627 = vrot.lane.b32.xlu0 %v619, 112
      %v628 = vpop.permute.xlu0 %627
      %629 = vrot.lane.b32.xlu0 %v626, 112
      %v630 = vpop.permute.xlu0 %629
      %v631 = vrot.slane %v628, 4
      %v632 = vrot.slane %v630, 4
      %v633 = vsel %vm327, %v631, %v632
      %v634 = vsel %vm329, %v628, %v633
      %636 = vst [vmem:[#allocation2] sm:$0x33] %v634
      %v637 = vld [vmem:[%s224] sm:$0x3f]
      %638 = vrot.lane.b32.xlu0 %v284, 32
      %v639 = vpop.permute.xlu0 %638
      %v640 = vrot.slane %v639, 6
      %vm641 = vcmask 261120
      %v642 = vsel %vm641, %v640, %v639
      %v644 = vmul.bf16 %v637, %v642
      %v646 = vcombine.low %v644, %v644
      %v648 = vunpack.c.l.s4 1983009808
      %v649 = vunpack.c.0.s8 %v648
      %v650 = vlaneseq
      %v651 = vshrl.u32 %v650, 7
      %v652 = vsub.s32 %v649, %v651
      %v653 = vrot.slane %v646, %v652
      %v655 = vunpack.c.l.s4 1983009808
      %v656 = vunpack.c.0.s8 %v655
      %v657 = vlaneseq
      %v658 = vshrl.u32 %v657, 7
      %v659 = vsub.s32 %v656, %v658
      %v660 = vrot.slane %v644, %v659
      %661 = vrot.lane.b32.xlu0 %v653, 96
      %v662 = vpop.permute.xlu0 %661
      %663 = vrot.lane.b32.xlu0 %v660, 96
      %v664 = vpop.permute.xlu0 %663
      %v665 = vrot.slane %v662, 4
      %v666 = vrot.slane %v664, 4
      %v667 = vsel %vm327, %v665, %v666
      %vm668 = vcmask 785408
      %v669 = vsel %vm668, %v662, %v667
      %671 = vst [vmem:[#allocation2] sm:$0xcc] %v669
      %v672 = vld [vmem:[%s224] sm:$0x3f]
      %v674 = vcombine.high %v672, %v672
      %v676 = vunpack.c.l.s4 1983009808
      %v677 = vunpack.c.0.s8 %v676
      %v678 = vlaneseq
      %v679 = vshrl.u32 %v678, 7
      %v680 = vsub.s32 %v677, %v679
      %v681 = vrot.slane %v672, %v680
      %v683 = vunpack.c.l.s4 1983009808
      %v684 = vunpack.c.0.s8 %v683
      %v685 = vlaneseq
      %v686 = vshrl.u32 %v685, 7
      %v687 = vsub.s32 %v684, %v686
      %v688 = vrot.slane %v674, %v687
      %689 = vrot.lane.b32.xlu0 %v681, 111
      %v690 = vpop.permute.xlu0 %689
      %691 = vrot.lane.b32.xlu0 %v688, 111
      %v692 = vpop.permute.xlu0 %691
      %v693 = vrot.slane %v690, 4
      %v694 = vrot.slane %v692, 4
      %v695 = vsel %vm327, %v693, %v694
      %v696 = vsel %vm385, %v690, %v695
      %698 = vst [vmem:[#allocation2 + $0x8] sm:$0x33] %v696
      %v699 = vld [vmem:[%s224] sm:$0x3f]
      %v701 = vcombine.low %v699, %v699
      %v703 = vunpack.c.l.s4 1983009808
      %v704 = vunpack.c.0.s8 %v703
      %v705 = vlaneseq
      %v706 = vshrl.u32 %v705, 7
      %v707 = vsub.s32 %v704, %v706
      %v708 = vrot.slane %v701, %v707
      %v710 = vunpack.c.l.s4 1983009808
      %v711 = vunpack.c.0.s8 %v710
      %v712 = vlaneseq
      %v713 = vshrl.u32 %v712, 7
      %v714 = vsub.s32 %v711, %v713
      %v715 = vrot.slane %v699, %v714
      %716 = vrot.lane.b32.xlu0 %v708, 95
      %v717 = vpop.permute.xlu0 %716
      %718 = vrot.lane.b32.xlu0 %v715, 95
      %v719 = vpop.permute.xlu0 %718
      %v720 = vrot.slane %v717, 4
      %v721 = vrot.slane %v719, 4
      %v722 = vsel %vm327, %v720, %v721
      %vm723 = vcmask 777216
      %v724 = vsel %vm723, %v717, %v722
      %726 = vst [vmem:[#allocation2 + $0x8] sm:$0xcc] %v724
      %v727 = vld [vmem:[%s224] sm:$0x3f]
      %v728 = vmul.bf16 %v727, %v453
      %v730 = vcombine.high %v728, %v728
      %v732 = vunpack.c.l.s4 1983009808
      %v733 = vunpack.c.0.s8 %v732
      %v734 = vlaneseq
      %v735 = vshrl.u32 %v734, 7
      %v736 = vsub.s32 %v733, %v735
      %v737 = vrot.slane %v728, %v736
      %v739 = vunpack.c.l.s4 1983009808
      %v740 = vunpack.c.0.s8 %v739
      %v741 = vlaneseq
      %v742 = vshrl.u32 %v741, 7
      %v743 = vsub.s32 %v740, %v742
      %v744 = vrot.slane %v730, %v743
      %745 = vrot.lane.b32.xlu0 %v737, 110
      %v746 = vpop.permute.xlu0 %745
      %747 = vrot.lane.b32.xlu0 %v744, 110
      %v748 = vpop.permute.xlu0 %747
      %v749 = vrot.slane %v746, 4
      %v750 = vrot.slane %v748, 4
      %v751 = vsel %vm327, %v749, %v750
      %v752 = vsel %vm479, %v746, %v751
      %754 = vst [vmem:[#allocation2 + $0x10] sm:$0x33] %v752
      %v755 = vld [vmem:[%s224] sm:$0x3f]
      %756 = vrot.lane.b32.xlu0 %v413, 34
      %v757 = vpop.permute.xlu0 %756
      %v758 = vrot.slane %v757, 6
      %vm759 = vcmask 277504
      %v760 = vsel %vm759, %v758, %v757
      %v762 = vmul.bf16 %v755, %v760
      %v764 = vcombine.low %v762, %v762
      %v766 = vunpack.c.l.s4 1983009808
      %v767 = vunpack.c.0.s8 %v766
      %v768 = vlaneseq
      %v769 = vshrl.u32 %v768, 7
      %v770 = vsub.s32 %v767, %v769
      %v771 = vrot.slane %v764, %v770
      %v773 = vunpack.c.l.s4 1983009808
      %v774 = vunpack.c.0.s8 %v773
      %v775 = vlaneseq
      %v776 = vshrl.u32 %v775, 7
      %v777 = vsub.s32 %v774, %v776
      %v778 = vrot.slane %v762, %v777
      %779 = vrot.lane.b32.xlu0 %v771, 94
      %v780 = vpop.permute.xlu0 %779
      %781 = vrot.lane.b32.xlu0 %v778, 94
      %v782 = vpop.permute.xlu0 %781
      %v783 = vrot.slane %v780, 4
      %v784 = vrot.slane %v782, 4
      %v785 = vsel %vm327, %v783, %v784
      %vm786 = vcmask 769024
      %v787 = vsel %vm786, %v780, %v785
      %789 = vst [vmem:[#allocation2 + $0x10] sm:$0xcc] %v787
      %s790 = scalar_lea.vmem %s1, 8
      %v791 = vld [vmem:[%s790] sm:$0xf]
      %v792 = vld [vmem:[#allocation2] sm:$0xff]
      %v793 = vld [vmem:[#allocation2 + $0x8] sm:$0xff]
      %v796 = vunpack.c.l.b16 %v792
      %v797 = vunpack.c.h.b16 %v792
      %v798 = vunpack.c.l.b16 %v793
      %v799 = vunpack.c.h.b16 %v793
      %v800 = vpack.c.b16 %v798, %v796
      %v801 = vpack.c.b16 %v799, %v797
      %v805 = vsel %vm501, %v791, 0
      %807 = vmatprep.subr.bf16.mxu0 %v801
      %808 = vmatpush1.bf16.msra.mxu0 %v800
      %809 = vmatprep.subr.bf16.mxu0 0
      %810 = vmatpush1.bf16.msra.mxu0 0
      %811 = vmatprep.subr.bf16.mxu0 0
      %812 = vmatpush1.bf16.msra.mxu0 0
      %813 = vmatprep.subr.bf16.mxu0 0
      %814 = vmatpush1.bf16.msra.mxu0 0
      %815 = vmatprep.subr.bf16.mxu0 0
      %816 = vmatpush1.bf16.msra.mxu0 0
      %817 = vmatprep.subr.bf16.mxu0 0
      %818 = vmatpush1.bf16.msra.mxu0 0
      %819 = vmatprep.subr.bf16.mxu0 0
      %820 = vmatpush1.bf16.msra.mxu0 0
      %821 = vmatprep.subr.bf16.mxu0 0
      %822 = vmatpush1.bf16.msra.mxu0 0
      %823 = vmatprep.subr.bf16.mxu0 0
      %824 = vmatpush1.bf16.msra.mxu0 0
      %825 = vmatprep.subr.bf16.mxu0 0
      %826 = vmatpush1.bf16.msra.mxu0 0
      %827 = vmatprep.subr.bf16.mxu0 0
      %828 = vmatpush1.bf16.msra.mxu0 0
      %829 = vmatprep.subr.bf16.mxu0 0
      %830 = vmatpush1.bf16.msra.mxu0 0
      %831 = vmatprep.subr.bf16.mxu0 0
      %832 = vmatpush1.bf16.msra.mxu0 0
      %833 = vmatprep.subr.bf16.mxu0 0
      %834 = vmatpush1.bf16.msra.mxu0 0
      %835 = vmatprep.subr.bf16.mxu0 0
      %836 = vmatpush1.bf16.msra.mxu0 0
      %837 = vmatprep.subr.bf16.mxu0 0
      %838 = vmatpush1.bf16.msra.mxu0 0
      %839 = vmatprep.mubr.bf16.mxu0 0
      %840 = vmatmul.mubr.bf16.gmra.mrb[0].mxu0 %v805
      %v841 = vpop.f32.mrb[0].mxu0
      %v842 = vadd.f32 %v489, %v841
      %v843 = vpop.f32.mrb[0].mxu0
      %v844 = vadd.f32 %v489, %v843
      %v845 = vpop.f32.mrb[0].mxu0
      %v846 = vpop.f32.mrb[0].mxu0
      %847 = vdwg.mxu0
      %s848 = scalar_lea.vmem %s233, 32
      %849 = vst [vmem:[%s848] sm:$0xff] %v842
      %850 = vst [vmem:[%s848 + $0x8] sm:$0xff] %v844
      %s851 = scalar_lea.vmem %s1, 12
      %v852 = vld [vmem:[%s851] sm:$0xf]
      %v853 = vld [vmem:[#allocation2 + $0x8] sm:$0xff]
      %v854 = vld [vmem:[#allocation2 + $0x10] sm:$0xff]
      %v857 = vunpack.c.l.b16 %v853
      %v858 = vunpack.c.h.b16 %v853
      %v859 = vunpack.c.l.b16 %v854
      %v860 = vunpack.c.h.b16 %v854
      %v861 = vpack.c.b16 %v859, %v857
      %v862 = vpack.c.b16 %v860, %v858
      %v866 = vsel %vm501, %v852, 0
      %868 = vmatprep.subr.bf16.mxu0 %v862
      %869 = vmatpush1.bf16.msra.mxu0 %v861
      %870 = vmatprep.subr.bf16.mxu0 0
      %871 = vmatpush1.bf16.msra.mxu0 0
      %872 = vmatprep.subr.bf16.mxu0 0
      %873 = vmatpush1.bf16.msra.mxu0 0
      %874 = vmatprep.subr.bf16.mxu0 0
      %875 = vmatpush1.bf16.msra.mxu0 0
      %876 = vmatprep.subr.bf16.mxu0 0
      %877 = vmatpush1.bf16.msra.mxu0 0
      %878 = vmatprep.subr.bf16.mxu0 0
      %879 = vmatpush1.bf16.msra.mxu0 0
      %880 = vmatprep.subr.bf16.mxu0 0
      %881 = vmatpush1.bf16.msra.mxu0 0
      %882 = vmatprep.subr.bf16.mxu0 0
      %883 = vmatpush1.bf16.msra.mxu0 0
      %884 = vmatprep.subr.bf16.mxu0 0
      %885 = vmatpush1.bf16.msra.mxu0 0
      %886 = vmatprep.subr.bf16.mxu0 0
      %887 = vmatpush1.bf16.msra.mxu0 0
      %888 = vmatprep.subr.bf16.mxu0 0
      %889 = vmatpush1.bf16.msra.mxu0 0
      %890 = vmatprep.subr.bf16.mxu0 0
      %891 = vmatpush1.bf16.msra.mxu0 0
      %892 = vmatprep.subr.bf16.mxu0 0
      %893 = vmatpush1.bf16.msra.mxu0 0
      %894 = vmatprep.subr.bf16.mxu0 0
      %895 = vmatpush1.bf16.msra.mxu0 0
      %896 = vmatprep.subr.bf16.mxu0 0
      %897 = vmatpush1.bf16.msra.mxu0 0
      %898 = vmatprep.subr.bf16.mxu0 0
      %899 = vmatpush1.bf16.msra.mxu0 0
      %900 = vmatprep.mubr.bf16.mxu0 0
      %901 = vmatmul.mubr.bf16.gmra.mrb[0].mxu0 %v866
      %v902 = vpop.f32.mrb[0].mxu0
      %v903 = vadd.f32 %v489, %v902
      %v904 = vpop.f32.mrb[0].mxu0
      %v905 = vadd.f32 %v489, %v904
      %v906 = vpop.f32.mrb[0].mxu0
      %v907 = vpop.f32.mrb[0].mxu0
      %908 = vdwg.mxu0
      %s909 = scalar_lea.vmem %s233, 48
      %910 = vst [vmem:[%s909] sm:$0xff] %v903
      %911 = vst [vmem:[%s909 + $0x8] sm:$0xff] %v905
      %p912 = scmp.lt.s32.totalorder %s19, 1
      %s913 = scalar_select %p912, %s19, 1
      %p914 = scmp.lt.s32.totalorder %s20, 0
      %s915 = scalar_select %p914, %s20, 0
      %s916 = smul.addr %s915, 8
      %s917 = smul.addr %s913, 8
      %s918 = sadd.s32 %s916, %s917
      %s919 = smul.addr %s918, 8
      %s920 = scalar_lea.vmem %s4, %s919
      // Predicated region
      $region37: #{upsample_conv.1} parent=35 // pred_check
        %p921 = pneg %p138
      $region38: #{upsample_conv.1} parent=35 // pred_check_branch
        %923 = sbr.rel (%p921) target = $region40
      $region39: #{upsample_conv.1} parent=35 // pred_region
        _
      $region40: #{upsample_conv.1} parent=35 // pred_fallthru
        _
    $region36: #{upsample_conv.1} parent=5 // pred_fallthru
      _
    %p924 = scmp.le.s32.totalorder 2, %s10
    // Predicated region
    $region41: #{upsample_conv.1} parent=5 // pred_check
      %p925 = pneg %p924
    $region42: #{upsample_conv.1} parent=5 // pred_check_branch
      %927 = sbr.rel (%p925) target = $region44
    $region43: #{upsample_conv.1} parent=5 // pred_region
      %s928 = ssub.s32 %s10, 2
      // Predicated region
      $region45: #{upsample_conv.1} parent=43 // pred_check
        %p929 = pneg %p144
      $region46: #{upsample_conv.1} parent=43 // pred_check_branch
        %931 = sbr.rel (%p929) target = $region48
      $region47: #{upsample_conv.1} parent=43 // pred_region
        %p932 = scmp.lt.s32.totalorder %s21, 1
        %s933 = scalar_select %p932, %s21, 1
        %p934 = scmp.lt.s32.totalorder %s22, 0
        %s935 = scalar_select %p934, %s22, 0
        %s936 = smul.addr %s935, 8
        %s937 = smul.addr %s933, 8
        %s938 = sadd.s32 %s936, %s937
        %s939 = smul.addr %s938, 8
        %s940 = scalar_lea.vmem %s4, %s939
      $region48: #{upsample_conv.1} parent=43 // pred_fallthru
        _
    $region44: #{upsample_conv.1} parent=5 // pred_fallthru
      _
  $region6: #{upsample_conv.1} parent=0 // loop_footer
    %s14 = sadd.s32 1, %s10
  $region7: #{upsample_conv.1} parent=0 // loop_footer_branch
    %9 = sbr.rel target = $region3
  $region8: #{upsample_conv.1} parent=0 // loop_exit
    _

</llo_original>
